<compile_context>
chip_gen: v7x
topology: tpu7x:2x2x1
jax: 0.10.0
libtpu: 0.0.40
codegen_flags: <defaults>
</compile_context>

<pallas_src>
import jax
import jax.numpy as jnp
from jax import lax
from jax.experimental import pallas as pl
from jax.experimental.pallas import tpu as pltpu

_LN_EPS = 1e-5  # PyTorch nn.LayerNorm default


def _round_up(x, m):
    return ((x + m - 1) // m) * m


def _pick_seq_tile(n):
    for t in (512, 256, 128, 64, 32, 16, 8):
        if n % t == 0:
            return t
    return n  # full extent (still a legal BlockSpec)


# ----------------------------------------------------------------------------
# Kernel 1: positional add + sequence-mean controller + LayerNorm
# ----------------------------------------------------------------------------
def _make_posln_ctrl_kernel(n_total):
    inv_n = 1.0 / float(n_total)

    def kernel(xemb_ref, pos_ref, gamma_ref, beta_ref, wc_ref, bc_ref,
               xn_ref, sig_ref, gs_acc):
        s = pl.program_id(1)

        x = xemb_ref[0] + pos_ref[...]                          # (tN, D) f32

        # Sequence-sum accumulator for the global state (reset per batch).
        @pl.when(s == 0)
        def _():
            gs_acc[...] = jnp.zeros_like(gs_acc)
        gs_acc[...] += jnp.sum(x, axis=0, keepdims=True)

        # LayerNorm over the feature dim (per token; independent of seq tile).
        mu = jnp.mean(x, axis=1, keepdims=True)
        xc = x - mu
        var = jnp.mean(xc * xc, axis=1, keepdims=True)
        xn = xc * lax.rsqrt(var + _LN_EPS) * gamma_ref[...] + beta_ref[...]
        xn_ref[...] = xn.reshape(xn_ref.shape).astype(xn_ref.dtype)

        # Modulatory controller at the last seq tile (pure VPU/EUP math).
        @pl.when(s == pl.num_programs(1) - 1)
        def _():
            gs = gs_acc[...] * inv_n                            # (1, D)
            ctrl = jnp.sum(gs * wc_ref[...], axis=1, keepdims=True)  # (C, 1)
            sig = jax.nn.sigmoid(ctrl + bc_ref[...])
            sig_ref[...] = sig.reshape(sig_ref.shape)

    return kernel


def posadd_norm_and_controller(x_emb, pos_embed, ln_gamma, ln_beta, wc, bc):
    """x_emb: [B,N,D] f32 (already gathered). Returns (x_norm bf16 [B,N,D], signals f32 [B,C])."""
    B, N, D = x_emb.shape
    C = wc.shape[0]
    tN = _pick_seq_tile(N)

    pos = pos_embed[0, :N, :].astype(jnp.float32)               # (N, D)
    gamma2 = ln_gamma.reshape(1, D).astype(jnp.float32)
    beta2 = ln_beta.reshape(1, D).astype(jnp.float32)
    wc2 = wc.astype(jnp.float32)                                # (C, D)
    bc2 = bc.reshape(C, 1).astype(jnp.float32)                  # (C, 1)

    # TODO(synk): at production sizes, single-buffer the constant-index inputs
    # (gamma/beta/wc/bc) via pipeline_mode=pl.Buffered(1) to shave VMEM.
    xn, sig = pl.pallas_call(
        _make_posln_ctrl_kernel(N),
        out_shape=(jax.ShapeDtypeStruct((B, N, D), jnp.bfloat16),
                   jax.ShapeDtypeStruct((B, C, 1), jnp.float32)),
        grid=(B, N // tN),
        in_specs=[
            pl.BlockSpec((1, tN, D), lambda b, s: (b, s, 0)),   # embeddings
            pl.BlockSpec((tN, D), lambda b, s: (s, 0)),         # pos embedding
            pl.BlockSpec((1, D), lambda b, s: (0, 0)),          # LN gamma
            pl.BlockSpec((1, D), lambda b, s: (0, 0)),          # LN beta
            pl.BlockSpec((C, D), lambda b, s: (0, 0)),          # controller W
            pl.BlockSpec((C, 1), lambda b, s: (0, 0)),          # controller b
        ],
        out_specs=(
            pl.BlockSpec((1, tN, D), lambda b, s: (b, s, 0)),
            pl.BlockSpec((1, C, 1), lambda b, s: (b, 0, 0)),
        ),
        scratch_shapes=[pltpu.VMEM((1, D), jnp.float32)],
        compiler_params=pltpu.CompilerParams(
            dimension_semantics=("parallel", "arbitrary"),
            vmem_limit_bytes=32 * 1024 * 1024),
    )(x_emb.astype(jnp.float32), pos, gamma2, beta2, wc2, bc2)

    return xn, sig.reshape(B, C)


# ----------------------------------------------------------------------------
# Kernel 2: LM head — lane-dense tiled bf16 matmul with f32 accumulation
# ----------------------------------------------------------------------------
def _lm_head_kernel(x_ref, w_ref, b_ref, o_ref):
    acc = jnp.dot(x_ref[...], w_ref[...], preferred_element_type=jnp.float32)
    o_ref[...] = (acc + b_ref[...]).astype(o_ref.dtype)


def _pick_head_tiles(M, V):
    try:
        kind = jax.devices()[0].device_kind.lower()
    except Exception:
        kind = ""
    if "v5 lite" in kind or "v5lite" in kind or "v5e" in kind:
        tm_cap, tn_cap = 128, 128       # 4x128x128 MXU; weight-stream HBM-bound
    else:
        tm_cap, tn_cap = 256, 512       # v6e/v7x: 256-wide MXU, big lane-dense tiles
    tm = tm_cap if M >= tm_cap else _round_up(M, 8)
    tn = tn_cap if V >= tn_cap else _round_up(V, 128)
    return tm, tn


def lm_head(x_norm, w_head_t, b_head):
    """x_norm: [B,N,D] bf16; w_head_t: [D,V] bf16 (cached layout); b_head: [V]."""
    B, N, D = x_norm.shape
    V = w_head_t.shape[1]
    M = B * N

    tm, tn = _pick_head_tiles(M, V)
    Mp, Vp = _round_up(M, tm), _round_up(V, tn)

    x2 = x_norm.reshape(M, D).astype(jnp.bfloat16)
    w2 = w_head_t.astype(jnp.bfloat16)                  # no-op if cached as bf16
    b2 = b_head.reshape(1, V).astype(jnp.float32)
    if Mp != M:
        x2 = jnp.pad(x2, ((0, Mp - M), (0, 0)))
    if Vp != V:
        w2 = jnp.pad(w2, ((0, 0), (0, Vp - V)))
        b2 = jnp.pad(b2, ((0, 0), (0, Vp - V)))

    # D fits in one block here; at very large D add a K grid axis ("arbitrary")
    # with a VMEM f32 accumulator + pl.when init/finalize.
    out = pl.pallas_call(
        _lm_head_kernel,
        out_shape=jax.ShapeDtypeStruct((Mp, Vp), jnp.float32),
        grid=(Mp // tm, Vp // tn),
        in_specs=[
            pl.BlockSpec((tm, D), lambda i, j: (i, 0)),
            pl.BlockSpec((D, tn), lambda i, j: (0, j)),   # lane-dense weight tile
            pl.BlockSpec((1, tn), lambda i, j: (0, j)),
        ],
        out_specs=pl.BlockSpec((tm, tn), lambda i, j: (i, j)),
        compiler_params=pltpu.CompilerParams(
            dimension_semantics=("parallel", "parallel"),
            vmem_limit_bytes=32 * 1024 * 1024),
    )(x2, w2, b2)

    if Mp != M or Vp != V:
        out = out[:M, :V]
    return out.reshape(B, N, V)


# ----------------------------------------------------------------------------
# Full forward (mirrors ASNST_Model.forward)
# ----------------------------------------------------------------------------
def asnst_forward(input_ids, params):
    # Embedding gather in plain XLA: O(N*D) DMA, no V x D table VMEM residency.
    x_emb = jnp.take(params["embed"], input_ids, axis=0)        # (B, N, D) f32
    x_norm, signals = posadd_norm_and_controller(
        x_emb, params["pos_embed"], params["ln_gamma"], params["ln_beta"],
        params["wc"], params["bc"])
    # The reference `self.layers` is an empty nn.ModuleList, so the modulatory
    # `signals` are computed (forward fidelity) but feed nothing downstream.
    del signals
    return lm_head(x_norm, params["w_head_t"], params["b_head"])


if __name__ == "__main__":
    batch, seq = 2, 8
    embed_dim, vocab_size, max_len, ctrl_out = 32, 256, 16, 10

    key = jax.random.PRNGKey(0)
    k_ids, k_emb, k_pos, k_wc, k_bc, k_wh, k_bh = jax.random.split(key, 7)

    bound = 1.0 / (embed_dim ** 0.5)   # nn.Linear default init bound
    w_head_f32 = jax.random.uniform(
        k_wh, (vocab_size, embed_dim), jnp.float32, -bound, bound)
    params = {
        "embed": jax.random.normal(k_emb, (vocab_size, embed_dim), jnp.float32),
        "pos_embed": jax.random.normal(k_pos, (1, max_len, embed_dim), jnp.float32),
        "ln_gamma": jnp.ones((embed_dim,), jnp.float32),
        "ln_beta": jnp.zeros((embed_dim,), jnp.float32),
        "wc": jax.random.uniform(k_wc, (ctrl_out, embed_dim), jnp.float32, -bound, bound),
        "bc": jax.random.uniform(k_bc, (ctrl_out,), jnp.float32, -bound, bound),
        # One-time cached head-weight layout: (D, V) bf16 -> lane-dense weight
        # DMAs + standard LHS-last x RHS-first MXU contraction in the kernel.
        "w_head_t": w_head_f32.T.astype(jnp.bfloat16),
        "b_head": jax.random.uniform(k_bh, (vocab_size,), jnp.float32, -bound, bound),
    }
    input_ids = jax.random.randint(k_ids, (batch, seq), 0, vocab_size, dtype=jnp.int32)

    logits = asnst_forward(input_ids, params)
    logits = jax.block_until_ready(logits)
    assert logits.shape == (batch, seq, vocab_size)

    # Pure-JAX f32 reference of the same forward.
    x = params["embed"][input_ids] + params["pos_embed"][:, :seq, :]
    gs = x.mean(axis=1)
    sig_expect = jax.nn.sigmoid(gs @ params["wc"].T + params["bc"])
    mu = x.mean(-1, keepdims=True)
    var = ((x - mu) ** 2).mean(-1, keepdims=True)
    xn = (x - mu) / jnp.sqrt(var + _LN_EPS) * params["ln_gamma"] + params["ln_beta"]
    logits_ref = xn @ w_head_f32.T + params["b_head"]

    assert bool(jnp.allclose(logits, logits_ref, atol=5e-2, rtol=5e-2)), \
        "logits mismatch vs reference"

    # Spot-check the (downstream-unused) modulatory controller output too.
    x_emb_chk = jnp.take(params["embed"], input_ids, axis=0)
    _, signals = posadd_norm_and_controller(
        x_emb_chk, params["pos_embed"], params["ln_gamma"], params["ln_beta"],
        params["wc"], params["bc"])
    signals = jax.block_until_ready(signals)
    assert signals.shape == (batch, ctrl_out)
    assert bool(jnp.allclose(signals, sig_expect, atol=2e-2, rtol=2e-2)), \
        "controller signals mismatch vs reference"

    print("KERNEL_OK")
</pallas_src>

<mosaic_0001>
module attributes {stable_mosaic.version = 11 : i64} {
  func.func @kernel(%arg0: i32, %arg1: i32, %arg2: memref<1x8x32xf32, #tpu.memory_space<vmem>>, %arg3: memref<8x32xf32, #tpu.memory_space<vmem>>, %arg4: memref<1x32xf32, #tpu.memory_space<vmem>>, %arg5: memref<1x32xf32, #tpu.memory_space<vmem>>, %arg6: memref<10x32xf32, #tpu.memory_space<vmem>>, %arg7: memref<10x1xf32, #tpu.memory_space<vmem>>, %arg8: memref<1x8x32xbf16, #tpu.memory_space<vmem>>, %arg9: memref<1x10x1xf32, #tpu.memory_space<vmem>>, %arg10: memref<1x32xf32, #tpu.memory_space<vmem>>) attributes {dimension_semantics = [#tpu.dimension_semantics<parallel>, #tpu.dimension_semantics<arbitrary>], iteration_bounds = array<i64: 2, 1>, scalar_prefetch = 0 : i64, scratch_operands = 1 : i64, tpu.core_type = #tpu.core_type<tc>, window_params = [{transform_indices = @transform_0, window_bounds = array<i64: 1, 8, 32>}, {transform_indices = @transform_1, window_bounds = array<i64: 8, 32>}, {pipeline_mode = #tpu.pipeline_mode<synchronous>, transform_indices = @transform_2, window_bounds = array<i64: 1, 32>}, {pipeline_mode = #tpu.pipeline_mode<synchronous>, transform_indices = @transform_3, window_bounds = array<i64: 1, 32>}, {pipeline_mode = #tpu.pipeline_mode<synchronous>, transform_indices = @transform_4, window_bounds = array<i64: 10, 32>}, {pipeline_mode = #tpu.pipeline_mode<synchronous>, transform_indices = @transform_5, window_bounds = array<i64: 10, 1>}, {transform_indices = @transform_6, window_bounds = array<i64: 1, 8, 32>}, {transform_indices = @transform_7, window_bounds = array<i64: 1, 10, 1>}]} {
    %c0 = arith.constant 0 : index
    %c0_0 = arith.constant 0 : index
    %c0_1 = arith.constant 0 : index
    %0 = vector.load %arg2[%c0, %c0_0, %c0_1] : memref<1x8x32xf32, #tpu.memory_space<vmem>>, vector<1x8x32xf32>
    %1 = vector.shape_cast %0 : vector<1x8x32xf32> to vector<8x32xf32>
    %c0_2 = arith.constant 0 : index
    %c0_3 = arith.constant 0 : index
    %2 = vector.load %arg3[%c0_2, %c0_3] : memref<8x32xf32, #tpu.memory_space<vmem>>, vector<8x32xf32>
    %3 = arith.addf %1, %2 : vector<8x32xf32>
    %c0_i32 = arith.constant 0 : i32
    %4 = arith.cmpi eq, %arg1, %c0_i32 : i32
    %5 = arith.extui %4 : i1 to i32
    %c0_i32_4 = arith.constant 0 : i32
    %6 = arith.cmpi ne, %5, %c0_i32_4 : i32
    scf.if %6 {
      %cst_23 = arith.constant 0.000000e+00 : f32
      %40 = vector.broadcast %cst_23 : f32 to vector<1x32xf32>
      %c0_24 = arith.constant 0 : index
      %c0_25 = arith.constant 0 : index
      %41 = vector.load %arg10[%c0_24, %c0_25] : memref<1x32xf32, #tpu.memory_space<vmem>>, vector<1x32xf32>
      tpu.vector_store %arg10[%c0_24, %c0_25], %40 {strides = array<i32>} : memref<1x32xf32, #tpu.memory_space<vmem>>, vector<1x32xf32>,
    } else {
    }
    %c0_5 = arith.constant 0 : index
    %c0_6 = arith.constant 0 : index
    %7 = vector.load %arg10[%c0_5, %c0_6] : memref<1x32xf32, #tpu.memory_space<vmem>>, vector<1x32xf32>
    %cst = arith.constant dense<0.000000e+00> : vector<32xf32>
    %8 = vector.multi_reduction <add>, %3, %cst [0] : vector<8x32xf32> to vector<32xf32>
    %9 = vector.shape_cast %8 : vector<32xf32> to vector<1x32xf32>
    %10 = arith.addf %7, %9 : vector<1x32xf32>
    %c0_7 = arith.constant 0 : index
    %c0_8 = arith.constant 0 : index
    %11 = vector.load %arg10[%c0_7, %c0_8] : memref<1x32xf32, #tpu.memory_space<vmem>>, vector<1x32xf32>
    tpu.vector_store %arg10[%c0_7, %c0_8], %10 {strides = array<i32>} : memref<1x32xf32, #tpu.memory_space<vmem>>, vector<1x32xf32>,
    %cst_9 = arith.constant dense<0.000000e+00> : vector<8xf32>
    %12 = vector.multi_reduction <add>, %3, %cst_9 [1] : vector<8x32xf32> to vector<8xf32>
    %13 = vector.shape_cast %12 : vector<8xf32> to vector<8x1xf32>
    %cst_10 = arith.constant 3.200000e+01 : f32
    %14 = vector.broadcast %cst_10 : f32 to vector<8x1xf32>
    %15 = arith.divf %13, %14 : vector<8x1xf32>
    %16 = vector.broadcast %15 : vector<8x1xf32> to vector<8x32xf32>
    %17 = arith.subf %3, %16 : vector<8x32xf32>
    %18 = arith.mulf %17, %17 : vector<8x32xf32>
    %cst_11 = arith.constant dense<0.000000e+00> : vector<8xf32>
    %19 = vector.multi_reduction <add>, %18, %cst_11 [1] : vector<8x32xf32> to vector<8xf32>
    %20 = vector.shape_cast %19 : vector<8xf32> to vector<8x1xf32>
    %cst_12 = arith.constant 3.200000e+01 : f32
    %21 = vector.broadcast %cst_12 : f32 to vector<8x1xf32>
    %22 = arith.divf %20, %21 : vector<8x1xf32>
    %cst_13 = arith.constant 9.99999974E-6 : f32
    %23 = vector.broadcast %cst_13 : f32 to vector<8x1xf32>
    %24 = arith.addf %22, %23 : vector<8x1xf32>
    %25 = math.rsqrt %24 : vector<8x1xf32>
    %26 = vector.broadcast %25 : vector<8x1xf32> to vector<8x32xf32>
    %27 = arith.mulf %17, %26 : vector<8x32xf32>
    %c0_14 = arith.constant 0 : index
    %c0_15 = arith.constant 0 : index
    %28 = vector.load %arg4[%c0_14, %c0_15] : memref<1x32xf32, #tpu.memory_space<vmem>>, vector<1x32xf32>
    %29 = vector.broadcast %28 : vector<1x32xf32> to vector<8x32xf32>
    %30 = arith.mulf %27, %29 : vector<8x32xf32>
    %c0_16 = arith.constant 0 : index
    %c0_17 = arith.constant 0 : index
    %31 = vector.load %arg5[%c0_16, %c0_17] : memref<1x32xf32, #tpu.memory_space<vmem>>, vector<1x32xf32>
    %32 = vector.broadcast %31 : vector<1x32xf32> to vector<8x32xf32>
    %33 = arith.addf %30, %32 : vector<8x32xf32>
    %34 = vector.shape_cast %33 : vector<8x32xf32> to vector<1x8x32xf32>
    %35 = arith.truncf %34 : vector<1x8x32xf32> to vector<1x8x32xbf16>
    %c0_18 = arith.constant 0 : index
    %c0_19 = arith.constant 0 : index
    %c0_20 = arith.constant 0 : index
    %36 = vector.load %arg8[%c0_18, %c0_19, %c0_20] : memref<1x8x32xbf16, #tpu.memory_space<vmem>>, vector<1x8x32xbf16>
    tpu.vector_store %arg8[%c0_18, %c0_19, %c0_20], %35 {strides = array<i32>} : memref<1x8x32xbf16, #tpu.memory_space<vmem>>, vector<1x8x32xbf16>,
    %c0_i32_21 = arith.constant 0 : i32
    %37 = arith.cmpi eq, %arg1, %c0_i32_21 : i32
    %38 = arith.extui %37 : i1 to i32
    %c0_i32_22 = arith.constant 0 : i32
    %39 = arith.cmpi ne, %38, %c0_i32_22 : i32
    scf.if %39 {
      %c0_23 = arith.constant 0 : index
      %c0_24 = arith.constant 0 : index
      %40 = vector.load %arg10[%c0_23, %c0_24] : memref<1x32xf32, #tpu.memory_space<vmem>>, vector<1x32xf32>
      %cst_25 = arith.constant 1.250000e-01 : f32
      %41 = vector.broadcast %cst_25 : f32 to vector<1x32xf32>
      %42 = arith.mulf %40, %41 : vector<1x32xf32>
      %c0_26 = arith.constant 0 : index
      %c0_27 = arith.constant 0 : index
      %43 = vector.load %arg6[%c0_26, %c0_27] : memref<10x32xf32, #tpu.memory_space<vmem>>, vector<10x32xf32>
      %44 = vector.broadcast %42 : vector<1x32xf32> to vector<10x32xf32>
      %45 = arith.mulf %44, %43 : vector<10x32xf32>
      %cst_28 = arith.constant dense<0.000000e+00> : vector<10xf32>
      %46 = vector.multi_reduction <add>, %45, %cst_28 [1] : vector<10x32xf32> to vector<10xf32>
      %47 = vector.shape_cast %46 : vector<10xf32> to vector<10x1xf32>
      %c0_29 = arith.constant 0 : index
      %c0_30 = arith.constant 0 : index
      %48 = vector.load %arg7[%c0_29, %c0_30] : memref<10x1xf32, #tpu.memory_space<vmem>>, vector<10x1xf32>
      %49 = arith.addf %47, %48 : vector<10x1xf32>
      %50 = arith.negf %49 : vector<10x1xf32>
      %51 = math.exp %50 : vector<10x1xf32>
      %cst_31 = arith.constant 1.000000e+00 : f32
      %52 = vector.broadcast %cst_31 : f32 to vector<10x1xf32>
      %53 = arith.addf %52, %51 : vector<10x1xf32>
      %54 = arith.divf %52, %53 : vector<10x1xf32>
      %55 = vector.shape_cast %54 : vector<10x1xf32> to vector<1x10x1xf32>
      %c0_32 = arith.constant 0 : index
      %c0_33 = arith.constant 0 : index
      %c0_34 = arith.constant 0 : index
      %56 = vector.load %arg9[%c0_32, %c0_33, %c0_34] : memref<1x10x1xf32, #tpu.memory_space<vmem>>, vector<1x10x1xf32>
      tpu.vector_store %arg9[%c0_32, %c0_33, %c0_34], %55 {strides = array<i32>} : memref<1x10x1xf32, #tpu.memory_space<vmem>>, vector<1x10x1xf32>,
    } else {
    }
    return
  }
  func.func @transform_0(%arg0: i32, %arg1: i32) -> (i32, i32, i32) {
    %c0_i32 = arith.constant 0 : i32
    %c0_i32_0 = arith.constant 0 : i32
    return %arg0, %arg1, %c0_i32 : i32, i32, i32
  }
  func.func @transform_1(%arg0: i32, %arg1: i32) -> (i32, i32) {
    %c0_i32 = arith.constant 0 : i32
    %c0_i32_0 = arith.constant 0 : i32
    return %arg1, %c0_i32 : i32, i32
  }
  func.func @transform_2(%arg0: i32, %arg1: i32) -> (i32, i32) {
    %c0_i32 = arith.constant 0 : i32
    %c0_i32_0 = arith.constant 0 : i32
    %c0_i32_1 = arith.constant 0 : i32
    return %c0_i32, %c0_i32_0 : i32, i32
  }
  func.func @transform_3(%arg0: i32, %arg1: i32) -> (i32, i32) {
    %c0_i32 = arith.constant 0 : i32
    %c0_i32_0 = arith.constant 0 : i32
    %c0_i32_1 = arith.constant 0 : i32
    return %c0_i32, %c0_i32_0 : i32, i32
  }
  func.func @transform_4(%arg0: i32, %arg1: i32) -> (i32, i32) {
    %c0_i32 = arith.constant 0 : i32
    %c0_i32_0 = arith.constant 0 : i32
    %c0_i32_1 = arith.constant 0 : i32
    return %c0_i32, %c0_i32_0 : i32, i32
  }
  func.func @transform_5(%arg0: i32, %arg1: i32) -> (i32, i32) {
    %c0_i32 = arith.constant 0 : i32
    %c0_i32_0 = arith.constant 0 : i32
    %c0_i32_1 = arith.constant 0 : i32
    return %c0_i32, %c0_i32_0 : i32, i32
  }
  func.func @transform_6(%arg0: i32, %arg1: i32) -> (i32, i32, i32) {
    %c0_i32 = arith.constant 0 : i32
    %c0_i32_0 = arith.constant 0 : i32
    return %arg0, %arg1, %c0_i32 : i32, i32, i32
  }
  func.func @transform_7(%arg0: i32, %arg1: i32) -> (i32, i32, i32) {
    %c0_i32 = arith.constant 0 : i32
    %c0_i32_0 = arith.constant 0 : i32
    %c0_i32_1 = arith.constant 0 : i32
    return %arg0, %c0_i32, %c0_i32_0 : i32, i32, i32
  }
}

</mosaic_0001>

<llo_original>
// kernel: tpu_custom_call.1
$region0: #{tpu_custom_call.1}
  #allocation0 [shape = 'u32[]', space=smem, size = 0x4, offset = 0x4, fixed_abs, tag = 'smem constant byte address 0x4 - core index']
  #allocation1 [shape = 'u32[144,128]{1,0:T(1,128)}', space=vmem, size = 0x12000, scoped, tag = 'internal scratch']
  #allocation2 [shape = 'f32[1,32]{1,0:T(1,128)}', space=vmem, size = 0x200, scoped, tag = 'scratch operand']
  %s0 = inlined_call_operand.vmem [shape: f32[2,8,32], index: 0, kind: input, shape index: {}]
  %s1 = inlined_call_operand.hbm [shape: f32[8,32], index: 1, kind: input, shape index: {}]
  %s2 = inlined_call_operand.hbm [shape: f32[1,32], index: 2, kind: input, shape index: {}]
  %s3 = inlined_call_operand.hbm [shape: f32[1,32], index: 3, kind: input, shape index: {}]
  %s4 = inlined_call_operand.vmem [shape: f32[10,32], index: 4, kind: input, shape index: {}]
  %s5 = inlined_call_operand.vmem [shape: f32[10,1], index: 5, kind: input, shape index: {}]
  %s6 = inlined_call_operand.hbm [shape: bf16[2,8,32], index: 6, kind: output, shape index: {0}]
  %s7 = inlined_call_operand.vmem [shape: f32[2,10,1], index: 7, kind: output, shape index: {1}]
  %8 = xla_tuple %s6, %s7
  %s9 = sld [smem:[#allocation0]]
  $region85: #{tpu_custom_call.1} parent=0
    _
  %s11 = ssub.s32 1, %s9
  %s12 = scalar_select 0, %s11, %s9
  $region1: #{tpu_custom_call.1} parent=0
    #allocation3 [shape = 'u8[4096]{0}', space=vmem, size = 0x1000, scoped, tag = 'input window, operand 1, single buffered']
    #allocation4 [shape = 's32[2]{0}', space=sflag, size = 0x8, scoped, tag = 'scoped memory for tpu_custom_call.1']
    #allocation5 [shape = 's32[2]{0}', space=sflag, size = 0x8, scoped, tag = 'scoped memory for tpu_custom_call.1']
    #allocation6 [shape = 'u8[512]{0}', space=vmem, size = 0x400, scoped, tag = 'input window, operand 2, single buffered']
    #allocation7 [shape = 's32[1]{0}', space=sflag, size = 0x4, scoped, tag = 'scoped memory for tpu_custom_call.1']
    #allocation8 [shape = 'u8[512]{0}', space=vmem, size = 0x400, scoped, tag = 'input window, operand 3, single buffered']
    #allocation9 [shape = 'u8[4096]{0}', space=vmem, size = 0x1000, scoped, tag = 'output window, operand 0']
    %13 = vsyncpa [#allocation4], 0
    %14 = vsyncpa [#allocation7], 0
    %15 = vsyncpa [#allocation5], 0
    %s16 = scalar_lea.sflag [#allocation5], 1
    %17 = vsyncpa %s16, 0
    loop: start=0, step=1, limit=4
    $region2: #{tpu_custom_call.1} parent=1 // loop_pre_header
      _
    $region3: #{tpu_custom_call.1} parent=1 // loop_header
      %s19 = sphi 0, %s23
      %p20 = scmp.ge.s32.totalorder %s19, 4
      %s26 = sphi 0, %s38
      %s27 = sphi 0, %s34
      %s28 = sphi 0, %s26
      %s29 = sphi 0, %s27
      %s30 = sphi 0, %s28
      %s31 = sphi 0, %s29
      %s43 = sphi 0, %s45
      %s46 = sphi 0, %s43
      %s47 = sphi 0, %s46
      %s63 = sphi 0, %s47
      %s69 = sphi 0, %s71
      %s72 = sphi 0, %s69
      %s73 = sphi 0, %s72
      %s89 = sphi 0, %s73
      %s93 = sphi 0, %s93
      %s95 = sphi 0, %s93
      %s96 = sphi 0, %s95
      %s110 = sphi 0, %s96
      %s114 = sphi 0, %s114
      %s116 = sphi 0, %s114
      %s117 = sphi 0, %s116
      %s131 = sphi 0, %s117
      %s135 = sphi 0, %s135
      %s137 = sphi 0, %s135
      %s138 = sphi 0, %s137
      %s152 = sphi 0, %s138
      %s156 = sphi 0, %s156
      %s158 = sphi 0, %s156
      %s159 = sphi 0, %s158
      %s173 = sphi 0, %s159
      %s181 = sphi 0, %s183
      %s184 = sphi 0, %s181
      %s185 = sphi 0, %s184
      %s201 = sphi 0, %s185
      %s207 = sphi 0, %s209
      %s210 = sphi 0, %s207
      %s211 = sphi 0, %s210
      %s227 = sphi 0, %s211
    $region4: #{tpu_custom_call.1} parent=1 // loop_header_branch
      %22 = sbr.rel (%p20) target = $region8
    $region5: #{tpu_custom_call.1} parent=1 // loop_body
      %s24 = ssub.s32 %s19, 1
      %s25 = ssub.s32 %s19, 2
      %s32 = sadd.s32 1, %s27
      %p33 = scmp.ge.s32.totalorder %s32, 1
      %s34 = scalar_select %p33, 0, %s32
      %s35 = sadd.s32 1, %s26
      %s36 = scalar_select %p33, %s35, %s26
      %p37 = scmp.ge.s32.totalorder %s36, 2
      %s38 = scalar_select %p37, 0, %s36
      %s39 = ssub.s32 %s26, %s38
      %s40 = ssub.s32 %s27, %s34
      %s41 = sor.u32 %s39, %s40
      %p42 = scmp.eq.s32.totalorder %s41, 0
      %s44 = sadd.s32 %s43, 1
      %s45 = scalar_select %p42, %s43, %s44
      %p48 = pneg %p42
      %p49 = scmp.eq.s32.totalorder %s19, 1
      %p50 = por %p48, %p49
      %p51 = scmp.ne.s32.totalorder %s43, %s46
      %p52 = scmp.eq.s32.totalorder %s19, 0
      %p53 = por %p51, %p52
      %p54 = scmp.ne.s32.totalorder %s43, %s46
      %p55 = scmp.eq.s32.totalorder %s24, 1
      %p56 = por %p54, %p55
      %p57 = scmp.ne.s32.totalorder %s46, %s47
      %p58 = scmp.eq.s32.totalorder %s24, 0
      %p59 = por %p57, %p58
      %p60 = scmp.ne.s32.totalorder %s46, %s47
      %p61 = scmp.eq.s32.totalorder %s25, 1
      %p62 = por %p60, %p61
      %p64 = scmp.ne.s32.totalorder %s47, %s63
      %p65 = scmp.eq.s32.totalorder %s25, 0
      %p66 = por %p64, %p65
      %s67 = ssub.s32 %s27, %s34
      %p68 = scmp.eq.s32.totalorder %s67, 0
      %s70 = sadd.s32 %s69, 1
      %s71 = scalar_select %p68, %s69, %s70
      %p74 = pneg %p68
      %p75 = scmp.eq.s32.totalorder %s19, 1
      %p76 = por %p74, %p75
      %p77 = scmp.ne.s32.totalorder %s69, %s72
      %p78 = scmp.eq.s32.totalorder %s19, 0
      %p79 = por %p77, %p78
      %p80 = scmp.ne.s32.totalorder %s69, %s72
      %p81 = scmp.eq.s32.totalorder %s24, 1
      %p82 = por %p80, %p81
      %p83 = scmp.ne.s32.totalorder %s72, %s73
      %p84 = scmp.eq.s32.totalorder %s24, 0
      %p85 = por %p83, %p84
      %p86 = scmp.ne.s32.totalorder %s72, %s73
      %p87 = scmp.eq.s32.totalorder %s25, 1
      %p88 = por %p86, %p87
      %p90 = scmp.ne.s32.totalorder %s73, %s89
      %p91 = scmp.eq.s32.totalorder %s25, 0
      %p92 = por %p90, %p91
      %s94 = sadd.s32 %s93, 1
      %p97 = scmp.eq.s32.totalorder %s19, 1
      %p98 = scmp.ne.s32.totalorder %s93, %s95
      %p99 = scmp.eq.s32.totalorder %s19, 0
      %p100 = por %p98, %p99
      %p101 = scmp.ne.s32.totalorder %s93, %s95
      %p102 = scmp.eq.s32.totalorder %s24, 1
      %p103 = por %p101, %p102
      %p104 = scmp.ne.s32.totalorder %s95, %s96
      %p105 = scmp.eq.s32.totalorder %s24, 0
      %p106 = por %p104, %p105
      %p107 = scmp.ne.s32.totalorder %s95, %s96
      %p108 = scmp.eq.s32.totalorder %s25, 1
      %p109 = por %p107, %p108
      %p111 = scmp.ne.s32.totalorder %s96, %s110
      %p112 = scmp.eq.s32.totalorder %s25, 0
      %p113 = por %p111, %p112
      %s115 = sadd.s32 %s114, 1
      %p118 = scmp.eq.s32.totalorder %s19, 1
      %p119 = scmp.ne.s32.totalorder %s114, %s116
      %p120 = scmp.eq.s32.totalorder %s19, 0
      %p121 = por %p119, %p120
      %p122 = scmp.ne.s32.totalorder %s114, %s116
      %p123 = scmp.eq.s32.totalorder %s24, 1
      %p124 = por %p122, %p123
      %p125 = scmp.ne.s32.totalorder %s116, %s117
      %p126 = scmp.eq.s32.totalorder %s24, 0
      %p127 = por %p125, %p126
      %p128 = scmp.ne.s32.totalorder %s116, %s117
      %p129 = scmp.eq.s32.totalorder %s25, 1
      %p130 = por %p128, %p129
      %p132 = scmp.ne.s32.totalorder %s117, %s131
      %p133 = scmp.eq.s32.totalorder %s25, 0
      %p134 = por %p132, %p133
      %s136 = sadd.s32 %s135, 1
      %p139 = scmp.eq.s32.totalorder %s19, 1
      %p140 = scmp.ne.s32.totalorder %s135, %s137
      %p141 = scmp.eq.s32.totalorder %s19, 0
      %p142 = por %p140, %p141
      %p143 = scmp.ne.s32.totalorder %s135, %s137
      %p144 = scmp.eq.s32.totalorder %s24, 1
      %p145 = por %p143, %p144
      %p146 = scmp.ne.s32.totalorder %s137, %s138
      %p147 = scmp.eq.s32.totalorder %s24, 0
      %p148 = por %p146, %p147
      %p149 = scmp.ne.s32.totalorder %s137, %s138
      %p150 = scmp.eq.s32.totalorder %s25, 1
      %p151 = por %p149, %p150
      %p153 = scmp.ne.s32.totalorder %s138, %s152
      %p154 = scmp.eq.s32.totalorder %s25, 0
      %p155 = por %p153, %p154
      %s157 = sadd.s32 %s156, 1
      %p160 = scmp.eq.s32.totalorder %s19, 1
      %p161 = scmp.ne.s32.totalorder %s156, %s158
      %p162 = scmp.eq.s32.totalorder %s19, 0
      %p163 = por %p161, %p162
      %p164 = scmp.ne.s32.totalorder %s156, %s158
      %p165 = scmp.eq.s32.totalorder %s24, 1
      %p166 = por %p164, %p165
      %p167 = scmp.ne.s32.totalorder %s158, %s159
      %p168 = scmp.eq.s32.totalorder %s24, 0
      %p169 = por %p167, %p168
      %p170 = scmp.ne.s32.totalorder %s158, %s159
      %p171 = scmp.eq.s32.totalorder %s25, 1
      %p172 = por %p170, %p171
      %p174 = scmp.ne.s32.totalorder %s159, %s173
      %p175 = scmp.eq.s32.totalorder %s25, 0
      %p176 = por %p174, %p175
      %s177 = ssub.s32 %s26, %s38
      %s178 = ssub.s32 %s27, %s34
      %s179 = sor.u32 %s177, %s178
      %p180 = scmp.eq.s32.totalorder %s179, 0
      %s182 = sadd.s32 %s181, 1
      %s183 = scalar_select %p180, %s181, %s182
      %p186 = pneg %p180
      %p187 = scmp.eq.s32.totalorder %s19, 1
      %p188 = por %p186, %p187
      %p189 = scmp.ne.s32.totalorder %s181, %s184
      %p190 = scmp.eq.s32.totalorder %s19, 0
      %p191 = por %p189, %p190
      %p192 = scmp.ne.s32.totalorder %s181, %s184
      %p193 = scmp.eq.s32.totalorder %s24, 1
      %p194 = por %p192, %p193
      %p195 = scmp.ne.s32.totalorder %s184, %s185
      %p196 = scmp.eq.s32.totalorder %s24, 0
      %p197 = por %p195, %p196
      %p198 = scmp.ne.s32.totalorder %s184, %s185
      %p199 = scmp.eq.s32.totalorder %s25, 1
      %p200 = por %p198, %p199
      %p202 = scmp.ne.s32.totalorder %s185, %s201
      %p203 = scmp.eq.s32.totalorder %s25, 0
      %p204 = por %p202, %p203
      %s205 = ssub.s32 %s26, %s38
      %p206 = scmp.eq.s32.totalorder %s205, 0
      %s208 = sadd.s32 %s207, 1
      %s209 = scalar_select %p206, %s207, %s208
      %p212 = pneg %p206
      %p213 = scmp.eq.s32.totalorder %s19, 1
      %p214 = por %p212, %p213
      %p215 = scmp.ne.s32.totalorder %s207, %s210
      %p216 = scmp.eq.s32.totalorder %s19, 0
      %p217 = por %p215, %p216
      %p218 = scmp.ne.s32.totalorder %s207, %s210
      %p219 = scmp.eq.s32.totalorder %s24, 1
      %p220 = por %p218, %p219
      %p221 = scmp.ne.s32.totalorder %s210, %s211
      %p222 = scmp.eq.s32.totalorder %s24, 0
      %p223 = por %p221, %p222
      %p224 = scmp.ne.s32.totalorder %s210, %s211
      %p225 = scmp.eq.s32.totalorder %s25, 1
      %p226 = por %p224, %p225
      %p228 = scmp.ne.s32.totalorder %s211, %s227
      %p229 = scmp.eq.s32.totalorder %s25, 0
      %p230 = por %p228, %p229
      %p231 = scmp.le.s32.totalorder 1, %s19
      %p232 = scmp.lt.s32.totalorder %s19, 3
      %p233 = pnand %p231, %p232
      %p234 = pneg %p233
      // Predicated region
      $region9: #{tpu_custom_call.1} parent=5 // pred_check
        _
      $region10: #{tpu_custom_call.1} parent=5 // pred_check_branch
        %236 = sbr.rel (%p233) target = $region12
      $region11: #{tpu_custom_call.1} parent=5 // pred_region
        %s237 = ssub.s32 %s19, 1
        // Predicated region
        $region13: #{tpu_custom_call.1} parent=11 // pred_check
          %p238 = pneg %p85
        $region14: #{tpu_custom_call.1} parent=11 // pred_check_branch
          %240 = sbr.rel (%p238) target = $region16
        $region15: #{tpu_custom_call.1} parent=11 // pred_region
          %s242 = ssub.s32 128, 128
          %243 = vsyncadd [#allocation4], %s242
          %s244 = smul.addr %s29, 128
          %s245 = scalar_lea.hbm %s1, %s244
          %s247 = sshll.u32 [#allocation3], 4
          %s248 = int_to_ptr.vmem [resolvable:$true] %s247
          %250 = dma.hbm_to_vmem [thread:$0]  %s245, 128, %s248, [#allocation4]
        $region16: #{tpu_custom_call.1} parent=11 // pred_fallthru
          _
        // Predicated region
        $region17: #{tpu_custom_call.1} parent=11 // pred_check
          %p251 = pneg %p106
        $region18: #{tpu_custom_call.1} parent=11 // pred_check_branch
          %253 = sbr.rel (%p251) target = $region20
        $region19: #{tpu_custom_call.1} parent=11 // pred_region
          %s255 = ssub.s32 16, 16
          %256 = vsyncadd [#allocation7], %s255
          %s258 = sshll.u32 [#allocation6], 4
          %s259 = int_to_ptr.vmem [resolvable:$true] %s258
          %261 = dma.hbm_to_vmem [thread:$0]  %s2, 16, %s259, [#allocation7]
        $region20: #{tpu_custom_call.1} parent=11 // pred_fallthru
          _
        // Predicated region
        $region21: #{tpu_custom_call.1} parent=11 // pred_check
          %p262 = pneg %p127
        $region22: #{tpu_custom_call.1} parent=11 // pred_check_branch
          %264 = sbr.rel (%p262) target = $region24
        $region23: #{tpu_custom_call.1} parent=11 // pred_region
          %s266 = ssub.s32 16, 16
          %267 = vsyncadd [#allocation7], %s266
          %s269 = sshll.u32 [#allocation8], 4
          %s270 = int_to_ptr.vmem [resolvable:$true] %s269
          %272 = dma.hbm_to_vmem [thread:$0]  %s3, 16, %s270, [#allocation7]
        $region24: #{tpu_custom_call.1} parent=11 // pred_fallthru
          _
        // Predicated region
        $region25: #{tpu_custom_call.1} parent=11 // pred_check
          %p273 = pneg %p148
        $region26: #{tpu_custom_call.1} parent=11 // pred_check_branch
          %275 = sbr.rel (%p273) target = $region28
        $region27: #{tpu_custom_call.1} parent=11 // pred_region
          _
        $region28: #{tpu_custom_call.1} parent=11 // pred_fallthru
          _
        // Predicated region
        $region29: #{tpu_custom_call.1} parent=11 // pred_check
          %p276 = pneg %p169
        $region30: #{tpu_custom_call.1} parent=11 // pred_check_branch
          %278 = sbr.rel (%p276) target = $region32
        $region31: #{tpu_custom_call.1} parent=11 // pred_region
          _
        $region32: #{tpu_custom_call.1} parent=11 // pred_fallthru
          _
      $region12: #{tpu_custom_call.1} parent=5 // pred_fallthru
        _
      %p279 = scmp.lt.s32.totalorder %s19, 2
      // Predicated region
      $region33: #{tpu_custom_call.1} parent=5 // pred_check
        %p280 = pneg %p279
      $region34: #{tpu_custom_call.1} parent=5 // pred_check_branch
        %282 = sbr.rel (%p280) target = $region36
      $region35: #{tpu_custom_call.1} parent=5 // pred_region
        // Predicated region
        $region37: #{tpu_custom_call.1} parent=35 // pred_check
          %p283 = pneg %p53
        $region38: #{tpu_custom_call.1} parent=35 // pred_check_branch
          %285 = sbr.rel (%p283) target = $region40
        $region39: #{tpu_custom_call.1} parent=35 // pred_region
          %p286 = scmp.lt.s32.totalorder %s26, 1
          %s287 = scalar_select %p286, %s26, 1
          %p288 = scmp.lt.s32.totalorder %s27, 0
          %s289 = scalar_select %p288, %s27, 0
          %s290 = sadd.s32 %s289, %s287
          %s291 = smul.addr %s290, 8
          %s292 = scalar_lea.vmem %s0, %s291
        $region40: #{tpu_custom_call.1} parent=35 // pred_fallthru
          _
      $region36: #{tpu_custom_call.1} parent=5 // pred_fallthru
        _
      %p293 = scmp.le.s32.totalorder 1, %s19
      %p294 = scmp.lt.s32.totalorder %s19, 3
      %p295 = pnand %p293, %p294
      %p296 = pneg %p295
      // Predicated region
      $region41: #{tpu_custom_call.1} parent=5 // pred_check
        _
      $region42: #{tpu_custom_call.1} parent=5 // pred_check_branch
        %298 = sbr.rel (%p295) target = $region44
      $region43: #{tpu_custom_call.1} parent=5 // pred_region
        %s299 = ssub.s32 %s19, 1
        // Predicated region
        $region45: #{tpu_custom_call.1} parent=43 // pred_check
          %p300 = pneg %p85
        $region46: #{tpu_custom_call.1} parent=43 // pred_check_branch
          %302 = sbr.rel (%p300) target = $region48
        $region47: #{tpu_custom_call.1} parent=43 // pred_region
          %303 = dma.done [#allocation4], 128
        $region48: #{tpu_custom_call.1} parent=43 // pred_fallthru
          _
        // Predicated region
        $region49: #{tpu_custom_call.1} parent=43 // pred_check
          %p304 = pneg %p106
        $region50: #{tpu_custom_call.1} parent=43 // pred_check_branch
          %306 = sbr.rel (%p304) target = $region52
        $region51: #{tpu_custom_call.1} parent=43 // pred_region
          %307 = dma.done [#allocation7], 16
        $region52: #{tpu_custom_call.1} parent=43 // pred_fallthru
          _
        // Predicated region
        $region53: #{tpu_custom_call.1} parent=43 // pred_check
          %p308 = pneg %p127
        $region54: #{tpu_custom_call.1} parent=43 // pred_check_branch
          %310 = sbr.rel (%p308) target = $region56
        $region55: #{tpu_custom_call.1} parent=43 // pred_region
          %311 = dma.done [#allocation7], 16
        $region56: #{tpu_custom_call.1} parent=43 // pred_fallthru
          _
        %p312 = scmp.lt.s32.totalorder %s28, 1
        %s313 = scalar_select %p312, %s28, 1
        %p314 = scmp.lt.s32.totalorder %s29, 0
        %s315 = scalar_select %p314, %s29, 0
        %s316 = sadd.s32 %s315, %s313
        %s317 = smul.addr %s316, 8
        %s318 = scalar_lea.vmem %s0, %s317
        %p319 = pneg %p59
        %p320 = pneg %p56
        %p321 = pneg %p85
        %p322 = pneg %p82
        %p323 = pneg %p106
        %p324 = pneg %p103
        %p325 = pneg %p127
        %p326 = pneg %p124
        %p327 = pneg %p148
        %p328 = pneg %p145
        %p329 = pneg %p169
        %p330 = pneg %p166
        %p331 = pneg %p197
        %p332 = pneg %p194
        %s333 = sand.u32 %s184, 1
        %s334 = scalar_lea.sflag [#allocation5], %s333
        %s335 = sand.u32 %s184, 1
        %s336 = smul.addr %s335, 4
        %s337 = scalar_lea.vmem [#allocation9], %s336
        %p338 = pneg %p223
        %p339 = pneg %p220
        %p340 = scmp.lt.s32.totalorder %s28, 1
        %s341 = scalar_select %p340, %s28, 1
        %s342 = smul.addr %s341, 2
        %s343 = smul.addr %s342, 8
        %s344 = scalar_lea.vmem %s7, %s343
        %p345 = scmp.lt.s32.totalorder %s28, 1
        %s346 = scalar_select %p345, %s28, 1
        %p347 = scmp.lt.s32.totalorder %s29, 0
        %s348 = scalar_select %p347, %s29, 0
        %s349 = sadd.s32 %s348, %s346
        %s350 = smul.addr %s349, 8
        %s351 = scalar_lea.vmem %s0, %s350
        %p352 = scmp.lt.s32.totalorder %s28, 1
        %s353 = scalar_select %p352, %s28, 1
        %s354 = smul.addr %s353, 2
        %s355 = smul.addr %s354, 8
        %s356 = scalar_lea.vmem %s7, %s355
        %v357 = vld [vmem:[%s351] sm:$0xff]
        %v358 = vld [vmem:[#allocation3] sm:$0xff]
        %v359 = vadd.f32 %v357, %v358
        %p360 = scmp.eq.s32.totalorder %s29, 0
        // Predicated region
        $region57: #{tpu_custom_call.1} parent=43 // pred_check
          %p361 = pneg %p360
        $region58: #{tpu_custom_call.1} parent=43 // pred_check_branch
          %363 = sbr.rel (%p361) target = $region60
        $region59: #{tpu_custom_call.1} parent=43 // pred_region
          %vm364 = vcmask 253952
          %365 = vst.msk [vmem:[#allocation2] sm:$0x1] %vm364, 0.0
        $region60: #{tpu_custom_call.1} parent=43 // pred_fallthru
          _
        %v366 = vld [vmem:[#allocation2] sm:$0x1]
        %vm367 = vcmask 261120
        %v368 = vsel %vm367, %v359, 0.0
        %v369 = vrot.slane %v368, 4
        %v370 = vadd.f32 %v368, %v369
        %v371 = vrot.slane %v370, 2
        %v372 = vadd.f32 %v370, %v371
        %v373 = vrot.slane %v372, 1
        %v374 = vadd.f32 %v372, %v373
        %v375 = vadd.f32 %v366, %v374
        %vm376 = vcmask 253952
        %377 = vst.msk [vmem:[#allocation2] sm:$0x1] %vm376, %v375
        %378 = vadd.xlane.f32.xlu0 %v368
        %v379 = vpop.xlane.xlu0 %378
        %v380 = vrcp.pop 32.0
        %v381 = vmul.f32 %v379, %v380
        %v382 = vsub.f32 %v359, %v381
        %v383 = vmul.f32 %v382, %v382
        %v384 = vsel %vm367, %v383, 0.0
        %385 = vadd.xlane.f32.xlu0 %v384
        %v386 = vpop.xlane.xlu0 %385
        %v387 = vmul.f32 %v386, %v380
        %v388 = vadd.f32 %v387, 1e-05
        %v389 = vrsqrt.pop %v388
        %v390 = vmul.f32 %v382, %v389
        %v391 = vld [vmem:[#allocation6] sm:$0x1]
        %v393 = vlaneseq
        %v394 = vshrl.u32 %v393, 7
        %v395 = vsub.s32 0, %v394
        %v396 = vrot.slane %v391, %v395
        %v398 = vmul.f32 %v390, %v396
        %v399 = vld [vmem:[#allocation8] sm:$0x1]
        %v401 = vlaneseq
        %v402 = vshrl.u32 %v401, 7
        %v403 = vsub.s32 0, %v402
        %v404 = vrot.slane %v399, %v403
        %v406 = vadd.f32 %v398, %v404
        %v407 = vpack.c.bf16 %v406, %v406
        %vm408 = vcmask 257024
        %409 = vst.msk [vmem:[%s337] sm:$0xf] %vm408, %v407
        // Predicated region
        $region61: #{tpu_custom_call.1} parent=43 // pred_check
          %p410 = pneg %p360
        $region62: #{tpu_custom_call.1} parent=43 // pred_check_branch
          %412 = sbr.rel (%p410) target = $region64
        $region63: #{tpu_custom_call.1} parent=43 // pred_region
          %v413 = vld [vmem:[#allocation2] sm:$0x1]
          %v414 = vmul.f32 %v413, 0.125
          %v415 = vld [vmem:[%s4] sm:$0xff]
          %v416 = vld [vmem:[%s4 + $0x8] sm:$0x3]
          %v418 = vlaneseq
          %v419 = vshrl.u32 %v418, 7
          %v420 = vsub.s32 0, %v419
          %v421 = vrot.slane %v414, %v420
          %v423 = vmul.f32 %v421, %v415
          %v424 = vmul.f32 %v421, %v416
          %v425 = vsel %vm367, %v423, 0.0
          %426 = vadd.xlane.f32.xlu0 %v425
          %v427 = vpop.xlane.xlu0 %426
          %vm428 = vcmask 254976
          %v429 = vsel %vm428, %v424, 0.0
          %430 = vadd.xlane.f32.xlu0 %v429
          %v431 = vpop.xlane.xlu0 %430
          %v432 = vld [vmem:[%s5] sm:$0xff]
          %v433 = vld [vmem:[%s5 + $0x8] sm:$0x3]
          %v434 = vadd.f32 %v427, %v432
          %v435 = vadd.f32 %v431, %v433
          %v436 = vxor.u32 %v434, 2147483648
          %v437 = vxor.u32 %v435, 2147483648
          %v438 = vmul.f32 %v436, 1.442695
          %v439 = vpow.pop %v438
          %v440 = vmul.f32 %v437, 1.442695
          %v441 = vpow.pop %v440
          %v442 = vadd.f32 %v439, 1.0
          %v443 = vadd.f32 %v441, 1.0
          %v444 = vrcp.pop %v442
          %v445 = vmul.f32 1.0, %v444
          %v446 = vrcp.pop %v443
          %v447 = vmul.f32 1.0, %v446
          %vm448 = vcmask 7168
          %449 = vst.msk [vmem:[%s356] sm:$0xff] %vm448, %v445
          %vm450 = vcmask 1024
          %451 = vst.msk [vmem:[%s356 + $0x8] sm:$0x3] %vm450, %v447
        $region64: #{tpu_custom_call.1} parent=43 // pred_fallthru
          _
        %s452 = sand.u32 %s184, 1
        %s453 = scalar_lea.sflag [#allocation5], %s452
        %s454 = sand.u32 %s184, 1
        %s455 = smul.addr %s454, 4
        %s456 = scalar_lea.vmem [#allocation9], %s455
        %p457 = scmp.lt.s32.totalorder %s28, 1
        %s458 = scalar_select %p457, %s28, 1
        %s459 = smul.addr %s458, 2
        %s460 = smul.addr %s459, 8
        %s461 = scalar_lea.vmem %s7, %s460
        // Predicated region
        $region65: #{tpu_custom_call.1} parent=43 // pred_check
          %p462 = pneg %p194
        $region66: #{tpu_custom_call.1} parent=43 // pred_check_branch
          %464 = sbr.rel (%p462) target = $region68
        $region67: #{tpu_custom_call.1} parent=43 // pred_region
          %s466 = ssub.s32 64, 64
          %467 = vsyncadd %s453, %s466
          %s468 = sadd.s32 %s29, %s28
          %s469 = smul.addr %s468, 64
          %s470 = scalar_lea.hbm %s6, %s469
          %s472 = sshll.u32 %s456, 4
          %s473 = int_to_ptr.vmem [resolvable:$true] %s472
          %475 = dma.vmem_to_hbm [thread:$0]  %s473, 64, %s470, %s453
        $region68: #{tpu_custom_call.1} parent=43 // pred_fallthru
          _
        // Predicated region
        $region69: #{tpu_custom_call.1} parent=43 // pred_check
          %p476 = pneg %p220
        $region70: #{tpu_custom_call.1} parent=43 // pred_check_branch
          %478 = sbr.rel (%p476) target = $region72
        $region71: #{tpu_custom_call.1} parent=43 // pred_region
          _
        $region72: #{tpu_custom_call.1} parent=43 // pred_fallthru
          _
      $region44: #{tpu_custom_call.1} parent=5 // pred_fallthru
        _
      %p479 = scmp.le.s32.totalorder 2, %s19
      // Predicated region
      $region73: #{tpu_custom_call.1} parent=5 // pred_check
        %p480 = pneg %p479
      $region74: #{tpu_custom_call.1} parent=5 // pred_check_branch
        %482 = sbr.rel (%p480) target = $region76
      $region75: #{tpu_custom_call.1} parent=5 // pred_region
        %s483 = ssub.s32 %s19, 2
        // Predicated region
        $region77: #{tpu_custom_call.1} parent=75 // pred_check
          %p484 = pneg %p200
        $region78: #{tpu_custom_call.1} parent=75 // pred_check_branch
          %486 = sbr.rel (%p484) target = $region80
        $region79: #{tpu_custom_call.1} parent=75 // pred_region
          %s487 = sand.u32 %s185, 1
          %s488 = scalar_lea.sflag [#allocation5], %s487
          %s489 = sand.u32 %s185, 1
          %s490 = smul.addr %s489, 4
          %s491 = scalar_lea.vmem [#allocation9], %s490
          %492 = dma.done %s488, 64
        $region80: #{tpu_custom_call.1} parent=75 // pred_fallthru
          _
        // Predicated region
        $region81: #{tpu_custom_call.1} parent=75 // pred_check
          %p493 = pneg %p226
        $region82: #{tpu_custom_call.1} parent=75 // pred_check_branch
          %495 = sbr.rel (%p493) target = $region84
        $region83: #{tpu_custom_call.1} parent=75 // pred_region
          %p496 = scmp.lt.s32.totalorder %s30, 1
          %s497 = scalar_select %p496, %s30, 1
          %s498 = smul.addr %s497, 2
          %s499 = smul.addr %s498, 8
          %s500 = scalar_lea.vmem %s7, %s499
        $region84: #{tpu_custom_call.1} parent=75 // pred_fallthru
          _
      $region76: #{tpu_custom_call.1} parent=5 // pred_fallthru
        _
    $region6: #{tpu_custom_call.1} parent=1 // loop_footer
      %s23 = sadd.s32 1, %s19
    $region7: #{tpu_custom_call.1} parent=1 // loop_footer_branch
      %18 = sbr.rel target = $region3
    $region8: #{tpu_custom_call.1} parent=1 // loop_exit
      _
    %501 = vsyncpa [#allocation4], 1
    %s502 = scalar_lea.sflag [#allocation4], 1
    %503 = vsyncpa %s502, 1
    %504 = vsyncpa [#allocation7], 1
    %505 = vsyncpa [#allocation5], 1
    %s506 = scalar_lea.sflag [#allocation5], 1
    %507 = vsyncpa %s506, 1

</llo_original>
